<compile_context>
chip_gen: v6e
topology: v6e:2x2x1
jax: 0.10.0
libtpu: 0.0.40
codegen_flags: <defaults>
</compile_context>

<pallas_src>
import functools

import jax
import jax.numpy as jnp
from jax.experimental import pallas as pl
from jax.experimental.pallas import tpu as pltpu

GN_EPS = 1e-5   # nn.GroupNorm default eps
WS_EPS = 1e-5   # WeightStandardizedConv2d eps for float32 inputs


# ---------------------------------------------------------------------------
# Kernels
# ---------------------------------------------------------------------------
def _mlp_kernel(t_ref, w_ref, b_ref, o_ref):
    """nn.Sequential(SiLU(), Linear(time_emb_dim, 2*dim_out))."""
    t = t_ref[...]
    t = t * jax.nn.sigmoid(t)  # SiLU
    o_ref[...] = (jnp.dot(t, w_ref[...], preferred_element_type=jnp.float32)
                  + b_ref[...]).astype(o_ref.dtype)


def _block_kernel(x_ref, w_ref, b_ref, gam_ref, bet_ref, maskn_ref, *rest,
                  use_scale_shift, res_mode):
    """Fused Block (+ optional residual) for one batch element.

    x_ref     : (1, H, W, Cin)        unpadded input tile (f32)
    w_ref     : (3, 3, Cin, Cout)     weight-standardized conv kernel (bf16)
    b_ref     : (1, Cout)             conv bias
    gam_ref   : (1, Cout)             GroupNorm weight
    bet_ref   : (1, Cout)             GroupNorm bias
    maskn_ref : (Cout, Cout)          same_group / (H*W*cpg)  (f32)
    rest      : [sc, sh]? [res]? [rw, rb]? o_ref, xcat_scratch
    """
    idx = 0
    sc_ref = sh_ref = res_ref = rw_ref = rb_ref = None
    if use_scale_shift:
        sc_ref, sh_ref = rest[idx], rest[idx + 1]
        idx += 2
    if res_mode != "none":
        res_ref = rest[idx]
        idx += 1
        if res_mode == "conv":
            rw_ref, rb_ref = rest[idx], rest[idx + 1]
            idx += 2
    o_ref, xcat_ref = rest[idx], rest[idx + 1]

    _, H, W, Cout = o_ref.shape
    Cin = x_ref.shape[3]

    # ---- build the 3 column-shifted, row-padded slabs in VMEM -------------
    # xcat[kx, r, w, :] == xpadded[r, w + kx, :]  (zeros outside the image)
    x = x_ref[0]                                    # (H, W, Cin)
    xcat_ref[1, pl.ds(1, H), :, :] = x
    xcat_ref[0, pl.ds(1, H), pl.ds(1, W - 1), :] = x[:, :W - 1, :]
    xcat_ref[2, pl.ds(1, H), pl.ds(0, W - 1), :] = x[:, 1:, :]
    # zero halo rows / columns every step (megacore-safe, cheap)
    zrow = jnp.zeros((1, W, Cin), jnp.float32)
    zcol = jnp.zeros((H, 1, Cin), jnp.float32)
    for kx in range(3):
        xcat_ref[kx, pl.ds(0, 1), :, :] = zrow
        xcat_ref[kx, pl.ds(H + 1, 1), :, :] = zrow
    xcat_ref[0, pl.ds(1, H), pl.ds(0, 1), :] = zcol
    xcat_ref[2, pl.ds(1, H), pl.ds(W - 1, 1), :] = zcol

    # ---- 3x3 conv as 9 MXU matmuls (bf16 operands, f32 accumulation) ------
    acc = jnp.zeros((H * W, Cout), jnp.float32)
    for ky in range(3):
        for kx in range(3):
            patch = xcat_ref[kx, pl.ds(ky, H), :, :].reshape(H * W, Cin)
            acc = acc + jnp.dot(patch.astype(jnp.bfloat16), w_ref[ky, kx],
                                preferred_element_type=jnp.float32)
    acc = acc + b_ref[...]                          # conv bias

    # ---- GroupNorm (centered variance, stats in f32) -----------------------
    mean_c = jnp.dot(jnp.sum(acc, axis=0, keepdims=True), maskn_ref[...],
                     preferred_element_type=jnp.float32)      # (1, Cout)
    d = acc - mean_c
    var_c = jnp.dot(jnp.sum(d * d, axis=0, keepdims=True), maskn_ref[...],
                    preferred_element_type=jnp.float32)
    y = d * (jax.lax.rsqrt(var_c + GN_EPS) * gam_ref[...]) + bet_ref[...]

    # ---- time-embedding scale/shift: x * (scale + 1) + shift ---------------
    if use_scale_shift:
        y = y * (sc_ref[...] + 1.0) + sh_ref[...]

    # ---- SiLU ---------------------------------------------------------------
    y = y * jax.nn.sigmoid(y)

    # ---- fused residual path ------------------------------------------------
    if res_mode == "identity":
        y = y + res_ref[0].reshape(H * W, Cout)
    elif res_mode == "conv":
        Cr = res_ref.shape[3]
        r = res_ref[0].reshape(H * W, Cr).astype(jnp.bfloat16)
        y = y + (jnp.dot(r, rw_ref[...], preferred_element_type=jnp.float32)
                 + rb_ref[...])

    o_ref[0] = y.reshape(H, W, Cout).astype(o_ref.dtype)


# ---------------------------------------------------------------------------
# Wrappers
# ---------------------------------------------------------------------------
def mlp_forward(t, w, b):
    B, T = t.shape
    D = w.shape[1]
    return pl.pallas_call(
        _mlp_kernel,
        out_shape=jax.ShapeDtypeStruct((B, D), jnp.float32),
        grid=(1,),
        in_specs=[pl.BlockSpec((B, T), lambda i: (0, 0)),
                  pl.BlockSpec((T, D), lambda i: (0, 0)),
                  pl.BlockSpec((1, D), lambda i: (0, 0))],
        out_specs=pl.BlockSpec((B, D), lambda i: (0, 0)),
    )(t, w, b.reshape(1, D))


def _weight_standardize(w_oihw, eps=WS_EPS):
    # einops.reduce(w, 'o ... -> o 1 1 1', mean / var(unbiased=False))
    m = jnp.mean(w_oihw, axis=(1, 2, 3), keepdims=True)
    v = jnp.mean((w_oihw - m) ** 2, axis=(1, 2, 3), keepdims=True)
    return (w_oihw - m) * jax.lax.rsqrt(v + eps)


def block_forward(x_nhwc, w_oihw, bias, gamma, beta, groups,
                  scale_shift=None, residual=None):
    """One fused Block.  residual: None | ("identity", r) | ("conv", r, w, b)."""
    B, H, W, Cin = x_nhwc.shape
    Cout = w_oihw.shape[0]
    cpg = Cout // groups

    # parameter prep (tiny): weight standardization, bf16 cast, group mask/n
    w_hwio = jnp.transpose(_weight_standardize(w_oihw),
                           (2, 3, 1, 0)).astype(jnp.bfloat16)
    gidx = jnp.arange(Cout) // cpg
    maskn = ((gidx[:, None] == gidx[None, :]).astype(jnp.float32)
             / float(H * W * cpg))

    inputs = [x_nhwc, w_hwio, bias.reshape(1, Cout), gamma.reshape(1, Cout),
              beta.reshape(1, Cout), maskn]
    in_specs = [
        pl.BlockSpec((1, H, W, Cin), lambda b: (b, 0, 0, 0)),
        pl.BlockSpec((3, 3, Cin, Cout), lambda b: (0, 0, 0, 0)),
        pl.BlockSpec((1, Cout), lambda b: (0, 0)),
        pl.BlockSpec((1, Cout), lambda b: (0, 0)),
        pl.BlockSpec((1, Cout), lambda b: (0, 0)),
        pl.BlockSpec((Cout, Cout), lambda b: (0, 0)),
    ]

    use_scale_shift = scale_shift is not None
    if use_scale_shift:
        scale, shift = scale_shift
        inputs += [scale, shift]
        in_specs += [pl.BlockSpec((1, Cout), lambda b: (b, 0)),
                     pl.BlockSpec((1, Cout), lambda b: (b, 0))]

    res_mode = "none"
    if residual is not None:
        res_mode = residual[0]
        r = residual[1]
        Cr = r.shape[3]
        inputs += [r]
        in_specs += [pl.BlockSpec((1, H, W, Cr), lambda b: (b, 0, 0, 0))]
        if res_mode == "conv":
            rw = jnp.transpose(residual[2][:, :, 0, 0],
                               (1, 0)).astype(jnp.bfloat16)   # (Cr, Cout)
            inputs += [rw, residual[3].reshape(1, Cout)]
            in_specs += [pl.BlockSpec((Cr, Cout), lambda b: (0, 0)),
                         pl.BlockSpec((1, Cout), lambda b: (0, 0))]

    kernel = functools.partial(_block_kernel,
                               use_scale_shift=use_scale_shift,
                               res_mode=res_mode)
    return pl.pallas_call(
        kernel,
        out_shape=jax.ShapeDtypeStruct((B, H, W, Cout), jnp.float32),
        grid=(B,),
        in_specs=in_specs,
        out_specs=pl.BlockSpec((1, H, W, Cout), lambda b: (b, 0, 0, 0)),
        scratch_shapes=[pltpu.VMEM((3, H + 2, W, Cin), jnp.float32)],
        compiler_params=pltpu.CompilerParams(
            dimension_semantics=("parallel",)),
    )(*inputs)


def resnet_block_forward(params, x_nchw, time_emb=None):
    """Equivalent of ResnetBlock.forward(x, time_emb).  x is NCHW (PyTorch)."""
    groups = params["groups"]
    Cout = params["conv1_w"].shape[0]
    x = jnp.transpose(x_nchw, (0, 2, 3, 1))          # NCHW -> NHWC

    scale_shift = None
    if time_emb is not None and "mlp_w" in params:
        te = mlp_forward(time_emb, params["mlp_w"], params["mlp_b"])
        scale_shift = (te[:, :Cout], te[:, Cout:])   # chunk(2, dim=channel)

    h = block_forward(x, params["conv1_w"], params["conv1_b"],
                      params["gn1_g"], params["gn1_b"], groups,
                      scale_shift=scale_shift)

    if "res_w" in params:                            # dim != dim_out
        residual = ("conv", x, params["res_w"], params["res_b"])
    else:                                            # nn.Identity()
        residual = ("identity", x)
    out = block_forward(h, params["conv2_w"], params["conv2_b"],
                        params["gn2_g"], params["gn2_b"], groups,
                        residual=residual)
    return jnp.transpose(out, (0, 3, 1, 2))          # NHWC -> NCHW


# ---------------------------------------------------------------------------
# Pure-JAX reference (mirrors the PyTorch math, NCHW) for validation
# ---------------------------------------------------------------------------
def _ref_forward(params, x, t):
    silu = lambda v: v * jax.nn.sigmoid(v)

    def conv(x, w, b, pad):
        y = jax.lax.conv_general_dilated(
            x, w, (1, 1), [(pad, pad), (pad, pad)],
            dimension_numbers=("NCHW", "OIHW", "NCHW"))
        return y + b.reshape(1, -1, 1, 1)

    def groupnorm(x, g, gamma, beta):
        B, C, H, W = x.shape
        xg = x.reshape(B, g, C // g, H, W)
        m = jnp.mean(xg, axis=(2, 3, 4), keepdims=True)
        v = jnp.mean((xg - m) ** 2, axis=(2, 3, 4), keepdims=True)
        xn = ((xg - m) * jax.lax.rsqrt(v + GN_EPS)).reshape(B, C, H, W)
        return xn * gamma.reshape(1, -1, 1, 1) + beta.reshape(1, -1, 1, 1)

    Cout = params["conv1_w"].shape[0]
    g = params["groups"]

    h = conv(x, _weight_standardize(params["conv1_w"]), params["conv1_b"], 1)
    h = groupnorm(h, g, params["gn1_g"], params["gn1_b"])
    if t is not None and "mlp_w" in params:
        te = silu(t) @ params["mlp_w"] + params["mlp_b"].reshape(1, -1)
        scale = te[:, :Cout].reshape(-1, Cout, 1, 1)
        shift = te[:, Cout:].reshape(-1, Cout, 1, 1)
        h = h * (scale + 1.0) + shift
    h = silu(h)

    h = conv(h, _weight_standardize(params["conv2_w"]), params["conv2_b"], 1)
    h = groupnorm(h, g, params["gn2_g"], params["gn2_b"])
    h = silu(h)

    if "res_w" in params:
        res = conv(x, params["res_w"], params["res_b"], 0)
    else:
        res = x
    return h + res


def _check(out, ref):
    # bf16 MXU operands (+ unit-variance standardized weights) => relaxed bound
    err = jnp.abs(out - ref)
    tol = 5e-2 + 2e-2 * jnp.abs(ref)
    assert bool(jnp.all(err <= tol)), f"max |pallas - ref| = {float(jnp.max(err))}"


# ---------------------------------------------------------------------------
if __name__ == "__main__":
    f32 = jnp.float32

    # ---- config A: dim != dim_out, with time embedding (res 1x1 conv) ------
    B, dim, dim_out, H, W = 2, 4, 16, 16, 16
    groups, time_dim = 8, 32
    ks = jax.random.split(jax.random.PRNGKey(0), 12)
    params_a = {
        "groups": groups,
        "mlp_w": 0.1 * jax.random.normal(ks[0], (time_dim, 2 * dim_out), f32),
        "mlp_b": 0.1 * jax.random.normal(ks[1], (2 * dim_out,), f32),
        "conv1_w": 0.2 * jax.random.normal(ks[2], (dim_out, dim, 3, 3), f32),
        "conv1_b": 0.1 * jax.random.normal(ks[3], (dim_out,), f32),
        "gn1_g": 1.0 + 0.1 * jax.random.normal(ks[4], (dim_out,), f32),
        "gn1_b": 0.1 * jax.random.normal(ks[5], (dim_out,), f32),
        "conv2_w": 0.2 * jax.random.normal(ks[6], (dim_out, dim_out, 3, 3), f32),
        "conv2_b": 0.1 * jax.random.normal(ks[7], (dim_out,), f32),
        "gn2_g": 1.0 + 0.1 * jax.random.normal(ks[8], (dim_out,), f32),
        "gn2_b": 0.1 * jax.random.normal(ks[9], (dim_out,), f32),
        "res_w": 0.2 * jax.random.normal(ks[10], (dim_out, dim, 1, 1), f32),
        "res_b": 0.1 * jax.random.normal(ks[11], (dim_out,), f32),
    }
    kx, kt = jax.random.split(jax.random.PRNGKey(1))
    x = jax.random.normal(kx, (B, dim, H, W), f32)
    t = jax.random.normal(kt, (B, time_dim), f32)

    out_a = jax.block_until_ready(resnet_block_forward(params_a, x, t))
    ref_a = jax.block_until_ready(_ref_forward(params_a, x, t))
    assert out_a.shape == (B, dim_out, H, W), out_a.shape
    _check(out_a, ref_a)

    # ---- config B: dim == dim_out, no time embedding (identity residual) ---
    dim_b = 16
    ksb = jax.random.split(jax.random.PRNGKey(2), 8)
    params_b = {
        "groups": groups,
        "conv1_w": 0.2 * jax.random.normal(ksb[0], (dim_b, dim_b, 3, 3), f32),
        "conv1_b": 0.1 * jax.random.normal(ksb[1], (dim_b,), f32),
        "gn1_g": 1.0 + 0.1 * jax.random.normal(ksb[2], (dim_b,), f32),
        "gn1_b": 0.1 * jax.random.normal(ksb[3], (dim_b,), f32),
        "conv2_w": 0.2 * jax.random.normal(ksb[4], (dim_b, dim_b, 3, 3), f32),
        "conv2_b": 0.1 * jax.random.normal(ksb[5], (dim_b,), f32),
        "gn2_g": 1.0 + 0.1 * jax.random.normal(ksb[6], (dim_b,), f32),
        "gn2_b": 0.1 * jax.random.normal(ksb[7], (dim_b,), f32),
    }
    xb = jax.random.normal(jax.random.PRNGKey(3), (B, dim_b, H, W), f32)
    out_b = jax.block_until_ready(resnet_block_forward(params_b, xb, None))
    ref_b = jax.block_until_ready(_ref_forward(params_b, xb, None))
    assert out_b.shape == (B, dim_b, H, W), out_b.shape
    _check(out_b, ref_b)

    print("KERNEL_OK")
</pallas_src>

<mosaic_0001>
module attributes {stable_mosaic.version = 11 : i64} {
  func.func @_mlp_kernel(%arg0: i32, %arg1: memref<2x32xf32, #tpu.memory_space<vmem>>, %arg2: memref<32x32xf32, #tpu.memory_space<vmem>>, %arg3: memref<1x32xf32, #tpu.memory_space<vmem>>, %arg4: memref<2x32xf32, #tpu.memory_space<vmem>>) attributes {dimension_semantics = [#tpu.dimension_semantics<arbitrary>], iteration_bounds = array<i64: 1>, scalar_prefetch = 0 : i64, scratch_operands = 0 : i64, tpu.core_type = #tpu.core_type<tc>, window_params = [{pipeline_mode = #tpu.pipeline_mode<synchronous>, transform_indices = @transform_0, window_bounds = array<i64: 2, 32>}, {pipeline_mode = #tpu.pipeline_mode<synchronous>, transform_indices = @transform_1, window_bounds = array<i64: 32, 32>}, {pipeline_mode = #tpu.pipeline_mode<synchronous>, transform_indices = @transform_2, window_bounds = array<i64: 1, 32>}, {pipeline_mode = #tpu.pipeline_mode<synchronous>, transform_indices = @transform_3, window_bounds = array<i64: 2, 32>}]} {
    %c0 = arith.constant 0 : index
    %c0_0 = arith.constant 0 : index
    %0 = vector.load %arg1[%c0, %c0_0] : memref<2x32xf32, #tpu.memory_space<vmem>>, vector<2x32xf32>
    %1 = arith.negf %0 : vector<2x32xf32>
    %2 = math.exp %1 : vector<2x32xf32>
    %cst = arith.constant 1.000000e+00 : f32
    %3 = vector.broadcast %cst : f32 to vector<2x32xf32>
    %4 = arith.addf %3, %2 : vector<2x32xf32>
    %5 = arith.divf %3, %4 : vector<2x32xf32>
    %6 = arith.mulf %0, %5 : vector<2x32xf32>
    %c0_1 = arith.constant 0 : index
    %c0_2 = arith.constant 0 : index
    %7 = vector.load %arg2[%c0_1, %c0_2] : memref<32x32xf32, #tpu.memory_space<vmem>>, vector<32x32xf32>
    %cst_3 = arith.constant dense<0.000000e+00> : vector<2x32xf32>
    %8 = tpu.matmul %6, %7, %cst_3 {dimension_numbers = #tpu.dot_dimension_numbers<[1], [0], [0], [1], [0, 0, 1, 1], [], []>} : vector<2x32xf32>, vector<32x32xf32>, vector<2x32xf32> -> vector<2x32xf32>
    %c0_4 = arith.constant 0 : index
    %c0_5 = arith.constant 0 : index
    %9 = vector.load %arg3[%c0_4, %c0_5] : memref<1x32xf32, #tpu.memory_space<vmem>>, vector<1x32xf32>
    %10 = vector.broadcast %9 : vector<1x32xf32> to vector<2x32xf32>
    %11 = arith.addf %8, %10 : vector<2x32xf32>
    %c0_6 = arith.constant 0 : index
    %c0_7 = arith.constant 0 : index
    %12 = vector.load %arg4[%c0_6, %c0_7] : memref<2x32xf32, #tpu.memory_space<vmem>>, vector<2x32xf32>
    tpu.vector_store %arg4[%c0_6, %c0_7], %11 {strides = array<i32>} : memref<2x32xf32, #tpu.memory_space<vmem>>, vector<2x32xf32>,
    return
  }
  func.func @transform_0(%arg0: i32) -> (i32, i32) {
    %c0_i32 = arith.constant 0 : i32
    %c0_i32_0 = arith.constant 0 : i32
    %c0_i32_1 = arith.constant 0 : i32
    return %c0_i32, %c0_i32_0 : i32, i32
  }
  func.func @transform_1(%arg0: i32) -> (i32, i32) {
    %c0_i32 = arith.constant 0 : i32
    %c0_i32_0 = arith.constant 0 : i32
    %c0_i32_1 = arith.constant 0 : i32
    return %c0_i32, %c0_i32_0 : i32, i32
  }
  func.func @transform_2(%arg0: i32) -> (i32, i32) {
    %c0_i32 = arith.constant 0 : i32
    %c0_i32_0 = arith.constant 0 : i32
    %c0_i32_1 = arith.constant 0 : i32
    return %c0_i32, %c0_i32_0 : i32, i32
  }
  func.func @transform_3(%arg0: i32) -> (i32, i32) {
    %c0_i32 = arith.constant 0 : i32
    %c0_i32_0 = arith.constant 0 : i32
    %c0_i32_1 = arith.constant 0 : i32
    return %c0_i32, %c0_i32_0 : i32, i32
  }
}

</mosaic_0001>

<llo_original>
// kernel: tpu_custom_call.1
$region0: #{tpu_custom_call.1}
  #allocation0 [shape = 'u32[]', space=smem, size = 0x4, offset = 0x4, fixed_abs, tag = 'smem constant byte address 0x4 - core index']
  #allocation1 [shape = 'u32[144,128]{1,0:T(1,128)}', space=vmem, size = 0x12000, scoped, tag = 'internal scratch']
  %s0 = inlined_call_operand.hbm [shape: f32[2,32], index: 0, kind: input, shape index: {}]
  %s1 = inlined_call_operand.hbm [shape: f32[32,32], index: 1, kind: input, shape index: {}]
  %s2 = inlined_call_operand.vmem [shape: f32[1,32], index: 2, kind: input, shape index: {}]
  %s3 = inlined_call_operand.hbm [shape: f32[2,32], index: 3, kind: output, shape index: {}]
  %s4 = sld [smem:[#allocation0]]
  $region30: #{tpu_custom_call.1} parent=0
    _
  %s6 = ssub.s32 1, %s4
  %s7 = scalar_select 0, %s6, %s4
  $region1: #{tpu_custom_call.1} parent=0
    #allocation2 [shape = 'u8[1024]{0}', space=vmem, size = 0x400, scoped, tag = 'input window, operand 0, single buffered']
    #allocation3 [shape = 's32[1]{0}', space=sflag, size = 0x4, scoped, tag = 'scoped memory for tpu_custom_call.1']
    #allocation4 [shape = 's32[1]{0}', space=sflag, size = 0x4, scoped, tag = 'scoped memory for tpu_custom_call.1']
    #allocation5 [shape = 'u8[16384]{0}', space=vmem, size = 0x4000, scoped, tag = 'input window, operand 1, single buffered']
    #allocation6 [shape = 's32[1]{0}', space=sflag, size = 0x4, scoped, tag = 'scoped memory for tpu_custom_call.1']
    #allocation7 [shape = 'u8[1024]{0}', space=vmem, size = 0x400, scoped, tag = 'output window, operand 0, single buffered']
    %8 = vsyncpa [#allocation3], 0
    %9 = vsyncpa [#allocation6], 0
    %10 = vsyncpa [#allocation4], 0
    // Predicated region
    $region2: #{tpu_custom_call.1} parent=1 // pred_check
      _
    $region3: #{tpu_custom_call.1} parent=1 // pred_check_branch
      %12 = sbr.rel (0) target = $region5
    $region4: #{tpu_custom_call.1} parent=1 // pred_region
      %s14 = ssub.s32 32, 32
      %15 = vsyncadd [#allocation3], %s14
      %s17 = sshll.u32 [#allocation2], 4
      %s18 = int_to_ptr.vmem [resolvable:$true] %s17
      %20 = dma.hbm_to_vmem [thread:$0]  %s0, 32, %s18, [#allocation3]
    $region5: #{tpu_custom_call.1} parent=1 // pred_fallthru
      _
    // Predicated region
    $region6: #{tpu_custom_call.1} parent=1 // pred_check
      _
    $region7: #{tpu_custom_call.1} parent=1 // pred_check_branch
      %22 = sbr.rel (0) target = $region9
    $region8: #{tpu_custom_call.1} parent=1 // pred_region
      %s24 = ssub.s32 512, 512
      %25 = vsyncadd [#allocation6], %s24
      %s26 = sshll.u32 [#allocation5], 4
      %s27 = int_to_ptr.vmem [resolvable:$true] %s26
      %32 = dma.hbm_to_vmem [thread:$0]  %s1, 512, %s27, [#allocation6], 128, 128, 8
    $region9: #{tpu_custom_call.1} parent=1 // pred_fallthru
      _
    // Predicated region
    $region10: #{tpu_custom_call.1} parent=1 // pred_check
      _
    $region11: #{tpu_custom_call.1} parent=1 // pred_check_branch
      %34 = sbr.rel (0) target = $region13
    $region12: #{tpu_custom_call.1} parent=1 // pred_region
      _
    $region13: #{tpu_custom_call.1} parent=1 // pred_fallthru
      _
    // Predicated region
    $region14: #{tpu_custom_call.1} parent=1 // pred_check
      _
    $region15: #{tpu_custom_call.1} parent=1 // pred_check_branch
      %36 = sbr.rel (0) target = $region17
    $region16: #{tpu_custom_call.1} parent=1 // pred_region
      %37 = dma.done [#allocation3], 32
    $region17: #{tpu_custom_call.1} parent=1 // pred_fallthru
      _
    // Predicated region
    $region18: #{tpu_custom_call.1} parent=1 // pred_check
      _
    $region19: #{tpu_custom_call.1} parent=1 // pred_check_branch
      %39 = sbr.rel (0) target = $region21
    $region20: #{tpu_custom_call.1} parent=1 // pred_region
      %40 = dma.done [#allocation6], 512
    $region21: #{tpu_custom_call.1} parent=1 // pred_fallthru
      _
    %v41 = vld [vmem:[#allocation2] sm:$0x3]
    %v42 = vxor.u32 %v41, 2147483648
    %v43 = vmul.f32 %v42, 1.442695
    %v44 = vpow.pop %v43
    %v45 = vadd.f32 %v44, 1.0
    %v46 = vrcp.pop %v45
    %v47 = vmul.f32 1.0, %v46
    %v48 = vmul.f32 %v41, %v47
    %v49 = vld [vmem:[#allocation5] sm:$0xff]
    %v50 = vld [vmem:[#allocation5 + $0x8] sm:$0xff]
    %v51 = vld [vmem:[#allocation5 + $0x10] sm:$0xff]
    %v52 = vld [vmem:[#allocation5 + $0x18] sm:$0xff]
    %v53 = vld [vmem:[%s2] sm:$0x1]
    %v55 = vlaneseq
    %v56 = vshrl.u32 %v55, 7
    %v57 = vsub.s32 0, %v56
    %v58 = vrot.slane %v53, %v57
    %vm60 = vcmask 261120
    %v62 = vsel %vm60, %v48, 0
    %64 = vmatprep.subr.mxu0 0.0
    %65 = vmatpush1.msra.mxu0 0.0
    %66 = vmatprep.subr.mxu0 0.0
    %67 = vmatpush1.msra.mxu0 0.0
    %68 = vmatprep.subr.mxu0 0.0
    %69 = vmatpush1.msra.mxu0 0.0
    %70 = vmatprep.subr.mxu0 0.0
    %71 = vmatpush1.msra.mxu0 0.0
    %72 = vmatprep.subr.mxu0 0.0
    %73 = vmatpush1.msra.mxu0 0.0
    %74 = vmatprep.subr.mxu0 0.0
    %75 = vmatpush1.msra.mxu0 0.0
    %76 = vmatprep.subr.mxu0 0.0
    %77 = vmatpush1.msra.mxu0 0.0
    %78 = vmatprep.subr.mxu0 0.0
    %79 = vmatpush1.msra.mxu0 0.0
    %80 = vmatprep.subr.mxu0 0.0
    %81 = vmatpush1.msra.mxu0 0.0
    %82 = vmatprep.subr.mxu0 0.0
    %83 = vmatpush1.msra.mxu0 0.0
    %84 = vmatprep.subr.mxu0 0.0
    %85 = vmatpush1.msra.mxu0 0.0
    %86 = vmatprep.subr.mxu0 0.0
    %87 = vmatpush1.msra.mxu0 0.0
    %88 = vmatprep.subr.mxu0 0.0
    %89 = vmatpush1.msra.mxu0 %v52
    %90 = vmatprep.subr.mxu0 0.0
    %91 = vmatpush1.msra.mxu0 %v51
    %92 = vmatprep.subr.mxu0 0.0
    %93 = vmatpush1.msra.mxu0 %v50
    %94 = vmatprep.subr.mxu0 0.0
    %95 = vmatpush1.msra.mxu0 %v49
    %96 = vmatprep.subr.mxu0 0.0
    %97 = vmatpush2.msra.mxu0 0.0
    %98 = vmatprep.subr.mxu0 0.0
    %99 = vmatpush2.msra.mxu0 0.0
    %100 = vmatprep.subr.mxu0 0.0
    %101 = vmatpush2.msra.mxu0 0.0
    %102 = vmatprep.subr.mxu0 0.0
    %103 = vmatpush2.msra.mxu0 0.0
    %104 = vmatprep.subr.mxu0 0.0
    %105 = vmatpush2.msra.mxu0 0.0
    %106 = vmatprep.subr.mxu0 0.0
    %107 = vmatpush2.msra.mxu0 0.0
    %108 = vmatprep.subr.mxu0 0.0
    %109 = vmatpush2.msra.mxu0 0.0
    %110 = vmatprep.subr.mxu0 0.0
    %111 = vmatpush2.msra.mxu0 0.0
    %112 = vmatprep.subr.mxu0 0.0
    %113 = vmatpush2.msra.mxu0 0.0
    %114 = vmatprep.subr.mxu0 0.0
    %115 = vmatpush2.msra.mxu0 0.0
    %116 = vmatprep.subr.mxu0 0.0
    %117 = vmatpush2.msra.mxu0 0.0
    %118 = vmatprep.subr.mxu0 0.0
    %119 = vmatpush2.msra.mxu0 0.0
    %120 = vmatprep.subr.mxu0 0.0
    %121 = vmatpush2.msra.mxu0 0.0
    %122 = vmatprep.subr.mxu0 0.0
    %123 = vmatpush2.msra.mxu0 0.0
    %124 = vmatprep.subr.mxu0 0.0
    %125 = vmatpush2.msra.mxu0 0.0
    %126 = vmatprep.subr.mxu0 0.0
    %127 = vmatpush2.msra.mxu0 0.0
    %128 = vmatprep.mubr.f32.mxu0 0.0
    %129 = vmatmul.mubr.f32.gmra.mxu0 %v62
    %v130 = vpop.f32.mrf.mxu0
    %v131 = vadd.f32 %v58, %v130
    %v132 = vpop.f32.mrf.mxu0
    %133 = vdwg.mxu0
    %vm134 = vcmask 254976
    %135 = vst.msk [vmem:[#allocation7] sm:$0x3] %vm134, %v131
    // Predicated region
    $region22: #{tpu_custom_call.1} parent=1 // pred_check
      _
    $region23: #{tpu_custom_call.1} parent=1 // pred_check_branch
      %137 = sbr.rel (0) target = $region25
    $region24: #{tpu_custom_call.1} parent=1 // pred_region
      %s139 = ssub.s32 32, 32
      %140 = vsyncadd [#allocation4], %s139
      %s142 = sshll.u32 [#allocation7], 4
      %s143 = int_to_ptr.vmem [resolvable:$true] %s142
      %145 = dma.vmem_to_hbm [thread:$0]  %s143, 32, %s3, [#allocation4]
    $region25: #{tpu_custom_call.1} parent=1 // pred_fallthru
      _
    // Predicated region
    $region26: #{tpu_custom_call.1} parent=1 // pred_check
      _
    $region27: #{tpu_custom_call.1} parent=1 // pred_check_branch
      %147 = sbr.rel (0) target = $region29
    $region28: #{tpu_custom_call.1} parent=1 // pred_region
      %148 = dma.done [#allocation4], 32
    $region29: #{tpu_custom_call.1} parent=1 // pred_fallthru
      _
    %149 = vsyncpa [#allocation3], 1
    %150 = vsyncpa [#allocation6], 1
    %151 = vsyncpa [#allocation4], 1

</llo_original>
